<compile_context>
chip_gen: v5e
topology: v5e:2x2
jax: 0.10.0
libtpu: 0.0.40
codegen_flags: <defaults>
</compile_context>

<pallas_src>
import functools
import math

import jax
import jax.numpy as jnp
from jax.experimental import pallas as pl
from jax.experimental.pallas import tpu as pltpu


def _resblock_kernel(x_ref, shift_ref, gamma_ref, beta_ref, w_ref, cb_ref, out_ref,
                     *, taps, s_valid, n_pad, num_groups, group_size, inv_count,
                     batch_block, conv_dtype, eps):
    # x_ref     : (nB, 4, C, S_pad)  space-to-depth input (conv_dtype); lanes >= s_valid are pad
    # shift_ref : (nB, 1, C, 1)      Dense(embed) shift, precomputed in the wrapper (f32)
    # gamma_ref : (1, 1, C, 1)       beta_ref : (1, 1, C, 1)   (f32)
    # w_ref     : (9, Co, C)         conv weight, tap-major (conv_dtype)
    # cb_ref    : (Co, 1)            conv bias (f32)
    # out_ref   : (nB, Co, n_pad)    f32; lane l = oy*W2 + ox (garbage rows/cols trimmed outside)
    h = x_ref[...].astype(jnp.float32) + shift_ref[...]            # (nB, 4, C, S_pad) f32

    # ---- GroupNorm statistics (f32, two-pass; pad lanes excluded via aligned [:s_valid]) ----
    hv = h[:, :, :, :s_valid]
    ps = jnp.sum(hv, axis=3, keepdims=True)                        # lane reduce -> (nB,4,C,1)
    ch_sum = ps[:, 0:1] + ps[:, 1:2] + ps[:, 2:3] + ps[:, 3:4]     # (nB,1,C,1)

    def _group_mean(per_ch):                                       # (nB,1,C,1) -> group-bcast mean
        parts = []
        for g in range(num_groups):                                # static, small
            seg = per_ch[:, :, g * group_size:(g + 1) * group_size, :]
            m = jnp.sum(seg, axis=2, keepdims=True) * inv_count
            parts.append(jnp.broadcast_to(m, seg.shape))
        return jnp.concatenate(parts, axis=2)                      # (nB,1,C,1)

    gmean = _group_mean(ch_sum)

    diff = hv - gmean                                              # consumed only by the reduce
    ps2 = jnp.sum(diff * diff, axis=3, keepdims=True)
    ch_sq = ps2[:, 0:1] + ps2[:, 1:2] + ps2[:, 2:3] + ps2[:, 3:4]
    gvar = _group_mean(ch_sq)

    rstd = jax.lax.rsqrt(gvar + eps)
    scale = rstd * gamma_ref[...]                                  # fold gamma into rstd
    bias = beta_ref[...] - gmean * scale                           # fold mean into the affine

    # ---- normalize + SiLU in the matmul operand dtype (bf16 on v6e/v7x, f32 path kept) ----
    hn = h.astype(conv_dtype) * scale.astype(conv_dtype) + bias.astype(conv_dtype)
    hn = hn * jax.nn.sigmoid(hn)                                   # (nB, 4, C, S_pad)

    # ---- Conv2d(3x3, stride 2, VALID) as 9 accumulating MXU dots per batch element ----
    cbias = cb_ref[...]                                            # (Co, 1)
    for b in range(batch_block):                                   # static
        acc = None
        for t, (p, off) in enumerate(taps):                        # 9 static taps
            rhs = hn[b, p, :, off:off + n_pad]                     # (C, n_pad)
            d = jnp.dot(w_ref[t], rhs, preferred_element_type=jnp.float32)
            acc = d if acc is None else acc + d
        out_ref[b] = (acc + cbias).astype(out_ref.dtype)


def resblock_down_one(x, embed, params, num_groups, *,
                      conv_dtype=jnp.bfloat16, batch_block=4):
    """x: (B, C, H, W) NCHW, embed: (B, E).  Returns (B, Co, Ho, Wo) in f32."""
    B, C, H, W = x.shape
    assert C % num_groups == 0
    # TODO(synk): odd H/W would need masked GroupNorm stats over the padded space-to-depth view.
    assert H % 2 == 0 and W % 2 == 0, "kernel currently assumes even spatial dims"
    Co = params["conv_w"].shape[0]
    Ho, Wo = (H - 3) // 2 + 1, (W - 3) // 2 + 1
    H2, W2 = H // 2, W // 2
    S = H2 * W2
    S_pad = S + W2 + 1            # tail pad so every tap slice [off, off + S) stays in bounds
    n_pad = S                     # per-batch output lane extent: full plane -> lane-dense stores
    cg = C // num_groups

    # Batch block: keep >= 2 grid steps when B > 1 (v7x megacore sharding + input pipelining),
    # and small enough that the f32 h temporary + double-buffered x fit v7x's 64 MiB VMEM.
    nB = max(1, min(batch_block, B if B == 1 else (B + 1) // 2))
    while nB > 1 and nB * 4 * C * S_pad * (4 + 3 * jnp.dtype(conv_dtype).itemsize) > (40 << 20):
        nB -= 1
    n_blk = pl.cdiv(B, nB)
    Bp = n_blk * nB

    # Dense(embed) shift: one tiny XLA matmul outside the kernel (f32).
    shift = embed.astype(jnp.float32) @ params["dense_w"].astype(jnp.float32).T
    shift = shift + params["dense_b"].astype(jnp.float32)                     # (B, C)

    # space-to-depth in the storage dtype: xs[b, 2*dy+dx, c, r*W2 + s] = x[b, c, 2r+dy, 2s+dx]
    # TODO(synk): fold this transpose into the pallas operand DMA (allow_input_fusion) to avoid
    # the standalone HBM round trip.
    xq = x.astype(conv_dtype)
    xs = xq.reshape(B, C, H2, 2, W2, 2)
    xs = jnp.transpose(xs, (0, 3, 5, 1, 2, 4)).reshape(B, 4, C, S)
    xs = jnp.pad(xs, ((0, Bp - B), (0, 0), (0, 0), (0, S_pad - S)))

    if Bp != B:
        shift = jnp.pad(shift, ((0, Bp - B), (0, 0)))
    shift4 = shift.reshape(Bp, 1, C, 1)

    gamma4 = params["gn_gamma"].astype(jnp.float32).reshape(1, 1, C, 1)
    beta4 = params["gn_beta"].astype(jnp.float32).reshape(1, 1, C, 1)
    cb = params["conv_b"].astype(jnp.float32).reshape(Co, 1)
    # (Co, C, 3, 3) -> (9, Co, C): tap-major so the kernel reads w_ref[t] without lane slicing.
    w9 = jnp.transpose(params["conv_w"].astype(conv_dtype), (2, 3, 0, 1)).reshape(9, Co, C)

    # tap (ky, kx): parity plane p = (ky%2)*2 + (kx%2), lane offset (ky//2)*W2 + (kx//2)
    taps = tuple(((ky % 2) * 2 + (kx % 2), (ky // 2) * W2 + (kx // 2))
                 for ky in range(3) for kx in range(3))

    kernel = functools.partial(
        _resblock_kernel, taps=taps, s_valid=S, n_pad=n_pad, num_groups=num_groups,
        group_size=cg, inv_count=1.0 / (cg * H * W), batch_block=nB,
        conv_dtype=conv_dtype, eps=1e-5)

    grid_spec = pltpu.PrefetchScalarGridSpec(
        num_scalar_prefetch=0,
        grid=(n_blk,),
        in_specs=[
            pl.BlockSpec((nB, 4, C, S_pad), lambda i: (i, 0, 0, 0)),   # x (space-to-depth)
            pl.BlockSpec((nB, 1, C, 1), lambda i: (i, 0, 0, 0)),       # dense shift
            pl.BlockSpec((1, 1, C, 1), lambda i: (0, 0, 0, 0)),        # gamma
            pl.BlockSpec((1, 1, C, 1), lambda i: (0, 0, 0, 0)),        # beta
            pl.BlockSpec((9, Co, C), lambda i: (0, 0, 0)),             # conv weight (tap-major)
            pl.BlockSpec((Co, 1), lambda i: (0, 0)),                   # conv bias
        ],
        out_specs=pl.BlockSpec((nB, Co, n_pad), lambda i: (i, 0, 0)),
    )

    # Rough per-step working set: double-buffered x block + h (f32) + hn + double-buffered out.
    esz = jnp.dtype(conv_dtype).itemsize
    est = (2 * nB * 4 * C * S_pad * esz + nB * 4 * C * S_pad * (4 + esz)
           + 2 * nB * Co * n_pad * 4 + (1 << 21))
    vmem_limit = None if est <= (32 << 20) else int(min(est * 3 // 2, 100 << 20))
    compiler_params = pltpu.CompilerParams(
        dimension_semantics=("parallel",), vmem_limit_bytes=vmem_limit)

    out_flat = pl.pallas_call(
        kernel,
        out_shape=jax.ShapeDtypeStruct((Bp, Co, n_pad), jnp.float32),
        grid_spec=grid_spec,
        compiler_params=compiler_params,
    )(xs, shift4, gamma4, beta4, w9, cb)

    # Output is already (batch, Co, oy*W2 + ox): just trim padded batch rows and garbage lanes.
    out = out_flat[:B].reshape(B, Co, H2, W2)[:, :, :Ho, :Wo]
    return out


def _reference(x, embed, params, num_groups):
    B, C, H, W = x.shape
    shift = embed @ params["dense_w"].T + params["dense_b"]           # (B, C)
    h = x + shift[:, :, None, None]
    hg = h.reshape(B, num_groups, -1)
    mu = hg.mean(-1, keepdims=True)
    var = hg.var(-1, keepdims=True)
    hn = ((hg - mu) / jnp.sqrt(var + 1e-5)).reshape(B, C, H, W)
    hn = hn * params["gn_gamma"][None, :, None, None] + params["gn_beta"][None, :, None, None]
    hs = hn * jax.nn.sigmoid(hn)
    out = jax.lax.conv_general_dilated(
        hs, params["conv_w"], window_strides=(2, 2), padding="VALID",
        dimension_numbers=("NCHW", "OIHW", "NCHW"))
    return out + params["conv_b"][None, :, None, None]


if __name__ == "__main__":
    B, C_in, C_out, E, H, W = 2, 4, 8, 32, 16, 16
    num_group1 = 2

    key = jax.random.PRNGKey(0)
    ks = jax.random.split(key, 8)
    params = {
        "dense_w": jax.random.normal(ks[0], (C_in, E), jnp.float32) / math.sqrt(E),
        "dense_b": 0.1 * jax.random.normal(ks[1], (C_in,), jnp.float32),
        "gn_gamma": 1.0 + 0.1 * jax.random.normal(ks[2], (C_in,), jnp.float32),
        "gn_beta": 0.1 * jax.random.normal(ks[3], (C_in,), jnp.float32),
        "conv_w": jax.random.normal(ks[4], (C_out, C_in, 3, 3), jnp.float32) / math.sqrt(C_in * 9),
        "conv_b": 0.1 * jax.random.normal(ks[5], (C_out,), jnp.float32),
    }
    x = jax.random.normal(ks[6], (B, C_in, H, W), jnp.float32)
    embed = jax.random.normal(ks[7], (B, E), jnp.float32)

    ref = jax.block_until_ready(_reference(x, embed, params, num_group1))

    # f32 path: tight tolerance (also validates the tap/parity mapping exactly).
    out_f32 = jax.block_until_ready(
        resblock_down_one(x, embed, params, num_group1, conv_dtype=jnp.float32))
    assert out_f32.shape == ref.shape == (B, C_out, 7, 7), (out_f32.shape, ref.shape)
    assert jnp.allclose(out_f32, ref, rtol=1e-3, atol=1e-3), \
        float(jnp.max(jnp.abs(out_f32 - ref)))

    # bf16 path (default): bf16 HBM input, bf16 normalize/SiLU/matmul operands, f32 accumulation.
    out_bf16 = jax.block_until_ready(resblock_down_one(x, embed, params, num_group1))
    assert out_bf16.shape == ref.shape
    assert jnp.allclose(out_bf16, ref, rtol=5e-2, atol=5e-2), \
        float(jnp.max(jnp.abs(out_bf16 - ref)))

    print("KERNEL_OK")
</pallas_src>

<mosaic_0001>
module attributes {stable_mosaic.version = 11 : i64} {
  func.func @_resblock_kernel(%arg0: i32, %arg1: memref<1x4x4x73xf32, #tpu.memory_space<vmem>>, %arg2: memref<1x1x4x1xf32, #tpu.memory_space<vmem>>, %arg3: memref<1x1x4x1xf32, #tpu.memory_space<vmem>>, %arg4: memref<1x1x4x1xf32, #tpu.memory_space<vmem>>, %arg5: memref<9x8x4xf32, #tpu.memory_space<vmem>>, %arg6: memref<8x1xf32, #tpu.memory_space<vmem>>, %arg7: memref<1x8x64xf32, #tpu.memory_space<vmem>>) attributes {dimension_semantics = [#tpu.dimension_semantics<parallel>], iteration_bounds = array<i64: 2>, scalar_prefetch = 0 : i64, scratch_operands = 0 : i64, tpu.core_type = #tpu.core_type<tc>, window_params = [{transform_indices = @transform_0, window_bounds = array<i64: 1, 4, 4, 73>}, {transform_indices = @transform_1, window_bounds = array<i64: 1, 1, 4, 1>}, {pipeline_mode = #tpu.pipeline_mode<synchronous>, transform_indices = @transform_2, window_bounds = array<i64: 1, 1, 4, 1>}, {pipeline_mode = #tpu.pipeline_mode<synchronous>, transform_indices = @transform_3, window_bounds = array<i64: 1, 1, 4, 1>}, {pipeline_mode = #tpu.pipeline_mode<synchronous>, transform_indices = @transform_4, window_bounds = array<i64: 9, 8, 4>}, {pipeline_mode = #tpu.pipeline_mode<synchronous>, transform_indices = @transform_5, window_bounds = array<i64: 8, 1>}, {transform_indices = @transform_6, window_bounds = array<i64: 1, 8, 64>}]} {
    %c0 = arith.constant 0 : index
    %c0_0 = arith.constant 0 : index
    %c0_1 = arith.constant 0 : index
    %c0_2 = arith.constant 0 : index
    %0 = vector.load %arg1[%c0, %c0_0, %c0_1, %c0_2] : memref<1x4x4x73xf32, #tpu.memory_space<vmem>>, vector<1x4x4x73xf32>
    %c0_3 = arith.constant 0 : index
    %c0_4 = arith.constant 0 : index
    %c0_5 = arith.constant 0 : index
    %c0_6 = arith.constant 0 : index
    %1 = vector.load %arg2[%c0_3, %c0_4, %c0_5, %c0_6] : memref<1x1x4x1xf32, #tpu.memory_space<vmem>>, vector<1x1x4x1xf32>
    %2 = vector.broadcast %1 : vector<1x1x4x1xf32> to vector<1x4x4x73xf32>
    %3 = arith.addf %0, %2 : vector<1x4x4x73xf32>
    %4 = vector.extract_strided_slice %3 {offsets = [0, 0, 0, 0], sizes = [1, 4, 4, 64], strides = [1, 1, 1, 1]} : vector<1x4x4x73xf32> to vector<1x4x4x64xf32>
    %cst = arith.constant dense<0.000000e+00> : vector<1x4x4xf32>
    %5 = vector.multi_reduction <add>, %4, %cst [3] : vector<1x4x4x64xf32> to vector<1x4x4xf32>
    %6 = vector.shape_cast %5 : vector<1x4x4xf32> to vector<1x4x4x1xf32>
    %7 = vector.extract_strided_slice %6 {offsets = [0, 0, 0, 0], sizes = [1, 1, 4, 1], strides = [1, 1, 1, 1]} : vector<1x4x4x1xf32> to vector<1x1x4x1xf32>
    %8 = vector.extract_strided_slice %6 {offsets = [0, 1, 0, 0], sizes = [1, 1, 4, 1], strides = [1, 1, 1, 1]} : vector<1x4x4x1xf32> to vector<1x1x4x1xf32>
    %9 = arith.addf %7, %8 : vector<1x1x4x1xf32>
    %10 = vector.extract_strided_slice %6 {offsets = [0, 2, 0, 0], sizes = [1, 1, 4, 1], strides = [1, 1, 1, 1]} : vector<1x4x4x1xf32> to vector<1x1x4x1xf32>
    %11 = arith.addf %9, %10 : vector<1x1x4x1xf32>
    %12 = vector.extract_strided_slice %6 {offsets = [0, 3, 0, 0], sizes = [1, 1, 4, 1], strides = [1, 1, 1, 1]} : vector<1x4x4x1xf32> to vector<1x1x4x1xf32>
    %13 = arith.addf %11, %12 : vector<1x1x4x1xf32>
    %14 = vector.extract_strided_slice %13 {offsets = [0, 0, 0, 0], sizes = [1, 1, 2, 1], strides = [1, 1, 1, 1]} : vector<1x1x4x1xf32> to vector<1x1x2x1xf32>
    %cst_7 = arith.constant dense<0.000000e+00> : vector<1x1x1xf32>
    %15 = vector.multi_reduction <add>, %14, %cst_7 [2] : vector<1x1x2x1xf32> to vector<1x1x1xf32>
    %16 = vector.shape_cast %15 : vector<1x1x1xf32> to vector<1x1x1x1xf32>
    %cst_8 = arith.constant 0.001953125 : f32
    %17 = vector.broadcast %cst_8 : f32 to vector<1x1x1x1xf32>
    %18 = arith.mulf %16, %17 : vector<1x1x1x1xf32>
    %19 = vector.shape_cast %18 : vector<1x1x1x1xf32> to vector<1x1x1x1xf32>
    %20 = vector.broadcast %19 : vector<1x1x1x1xf32> to vector<1x1x2x1xf32>
    %21 = vector.extract_strided_slice %13 {offsets = [0, 0, 2, 0], sizes = [1, 1, 2, 1], strides = [1, 1, 1, 1]} : vector<1x1x4x1xf32> to vector<1x1x2x1xf32>
    %cst_9 = arith.constant dense<0.000000e+00> : vector<1x1x1xf32>
    %22 = vector.multi_reduction <add>, %21, %cst_9 [2] : vector<1x1x2x1xf32> to vector<1x1x1xf32>
    %23 = vector.shape_cast %22 : vector<1x1x1xf32> to vector<1x1x1x1xf32>
    %cst_10 = arith.constant 0.001953125 : f32
    %24 = vector.broadcast %cst_10 : f32 to vector<1x1x1x1xf32>
    %25 = arith.mulf %23, %24 : vector<1x1x1x1xf32>
    %26 = vector.shape_cast %25 : vector<1x1x1x1xf32> to vector<1x1x1x1xf32>
    %27 = vector.broadcast %26 : vector<1x1x1x1xf32> to vector<1x1x2x1xf32>
    %28 = tpu.concatenate %20, %27 in 2 : vector<1x1x2x1xf32>, vector<1x1x2x1xf32> -> vector<1x1x4x1xf32>
    %29 = vector.broadcast %28 : vector<1x1x4x1xf32> to vector<1x4x4x64xf32>
    %30 = arith.subf %4, %29 : vector<1x4x4x64xf32>
    %31 = arith.mulf %30, %30 : vector<1x4x4x64xf32>
    %cst_11 = arith.constant dense<0.000000e+00> : vector<1x4x4xf32>
    %32 = vector.multi_reduction <add>, %31, %cst_11 [3] : vector<1x4x4x64xf32> to vector<1x4x4xf32>
    %33 = vector.shape_cast %32 : vector<1x4x4xf32> to vector<1x4x4x1xf32>
    %34 = vector.extract_strided_slice %33 {offsets = [0, 0, 0, 0], sizes = [1, 1, 4, 1], strides = [1, 1, 1, 1]} : vector<1x4x4x1xf32> to vector<1x1x4x1xf32>
    %35 = vector.extract_strided_slice %33 {offsets = [0, 1, 0, 0], sizes = [1, 1, 4, 1], strides = [1, 1, 1, 1]} : vector<1x4x4x1xf32> to vector<1x1x4x1xf32>
    %36 = arith.addf %34, %35 : vector<1x1x4x1xf32>
    %37 = vector.extract_strided_slice %33 {offsets = [0, 2, 0, 0], sizes = [1, 1, 4, 1], strides = [1, 1, 1, 1]} : vector<1x4x4x1xf32> to vector<1x1x4x1xf32>
    %38 = arith.addf %36, %37 : vector<1x1x4x1xf32>
    %39 = vector.extract_strided_slice %33 {offsets = [0, 3, 0, 0], sizes = [1, 1, 4, 1], strides = [1, 1, 1, 1]} : vector<1x4x4x1xf32> to vector<1x1x4x1xf32>
    %40 = arith.addf %38, %39 : vector<1x1x4x1xf32>
    %41 = vector.extract_strided_slice %40 {offsets = [0, 0, 0, 0], sizes = [1, 1, 2, 1], strides = [1, 1, 1, 1]} : vector<1x1x4x1xf32> to vector<1x1x2x1xf32>
    %cst_12 = arith.constant dense<0.000000e+00> : vector<1x1x1xf32>
    %42 = vector.multi_reduction <add>, %41, %cst_12 [2] : vector<1x1x2x1xf32> to vector<1x1x1xf32>
    %43 = vector.shape_cast %42 : vector<1x1x1xf32> to vector<1x1x1x1xf32>
    %cst_13 = arith.constant 0.001953125 : f32
    %44 = vector.broadcast %cst_13 : f32 to vector<1x1x1x1xf32>
    %45 = arith.mulf %43, %44 : vector<1x1x1x1xf32>
    %46 = vector.shape_cast %45 : vector<1x1x1x1xf32> to vector<1x1x1x1xf32>
    %47 = vector.broadcast %46 : vector<1x1x1x1xf32> to vector<1x1x2x1xf32>
    %48 = vector.extract_strided_slice %40 {offsets = [0, 0, 2, 0], sizes = [1, 1, 2, 1], strides = [1, 1, 1, 1]} : vector<1x1x4x1xf32> to vector<1x1x2x1xf32>
    %cst_14 = arith.constant dense<0.000000e+00> : vector<1x1x1xf32>
    %49 = vector.multi_reduction <add>, %48, %cst_14 [2] : vector<1x1x2x1xf32> to vector<1x1x1xf32>
    %50 = vector.shape_cast %49 : vector<1x1x1xf32> to vector<1x1x1x1xf32>
    %cst_15 = arith.constant 0.001953125 : f32
    %51 = vector.broadcast %cst_15 : f32 to vector<1x1x1x1xf32>
    %52 = arith.mulf %50, %51 : vector<1x1x1x1xf32>
    %53 = vector.shape_cast %52 : vector<1x1x1x1xf32> to vector<1x1x1x1xf32>
    %54 = vector.broadcast %53 : vector<1x1x1x1xf32> to vector<1x1x2x1xf32>
    %55 = tpu.concatenate %47, %54 in 2 : vector<1x1x2x1xf32>, vector<1x1x2x1xf32> -> vector<1x1x4x1xf32>
    %cst_16 = arith.constant 9.99999974E-6 : f32
    %56 = vector.broadcast %cst_16 : f32 to vector<1x1x4x1xf32>
    %57 = arith.addf %55, %56 : vector<1x1x4x1xf32>
    %58 = math.rsqrt %57 : vector<1x1x4x1xf32>
    %c0_17 = arith.constant 0 : index
    %c0_18 = arith.constant 0 : index
    %c0_19 = arith.constant 0 : index
    %c0_20 = arith.constant 0 : index
    %59 = vector.load %arg3[%c0_17, %c0_18, %c0_19, %c0_20] : memref<1x1x4x1xf32, #tpu.memory_space<vmem>>, vector<1x1x4x1xf32>
    %60 = arith.mulf %58, %59 : vector<1x1x4x1xf32>
    %c0_21 = arith.constant 0 : index
    %c0_22 = arith.constant 0 : index
    %c0_23 = arith.constant 0 : index
    %c0_24 = arith.constant 0 : index
    %61 = vector.load %arg4[%c0_21, %c0_22, %c0_23, %c0_24] : memref<1x1x4x1xf32, #tpu.memory_space<vmem>>, vector<1x1x4x1xf32>
    %62 = arith.mulf %28, %60 : vector<1x1x4x1xf32>
    %63 = arith.subf %61, %62 : vector<1x1x4x1xf32>
    %64 = vector.broadcast %60 : vector<1x1x4x1xf32> to vector<1x4x4x73xf32>
    %65 = arith.mulf %3, %64 : vector<1x4x4x73xf32>
    %66 = vector.broadcast %63 : vector<1x1x4x1xf32> to vector<1x4x4x73xf32>
    %67 = arith.addf %65, %66 : vector<1x4x4x73xf32>
    %68 = arith.negf %67 : vector<1x4x4x73xf32>
    %69 = math.exp %68 : vector<1x4x4x73xf32>
    %cst_25 = arith.constant 1.000000e+00 : f32
    %70 = vector.broadcast %cst_25 : f32 to vector<1x4x4x73xf32>
    %71 = arith.addf %70, %69 : vector<1x4x4x73xf32>
    %72 = arith.divf %70, %71 : vector<1x4x4x73xf32>
    %73 = arith.mulf %67, %72 : vector<1x4x4x73xf32>
    %c0_26 = arith.constant 0 : index
    %c0_27 = arith.constant 0 : index
    %74 = vector.load %arg6[%c0_26, %c0_27] : memref<8x1xf32, #tpu.memory_space<vmem>>, vector<8x1xf32>
    %75 = vector.extract_strided_slice %73 {offsets = [0, 0, 0, 0], sizes = [1, 1, 4, 64], strides = [1, 1, 1, 1]} : vector<1x4x4x73xf32> to vector<1x1x4x64xf32>
    %76 = vector.shape_cast %75 : vector<1x1x4x64xf32> to vector<4x64xf32>
    %c0_28 = arith.constant 0 : index
    %c0_29 = arith.constant 0 : index
    %c0_30 = arith.constant 0 : index
    %77 = vector.load %arg5[%c0_28, %c0_29, %c0_30] : memref<9x8x4xf32, #tpu.memory_space<vmem>>, vector<1x8x4xf32>
    %78 = vector.shape_cast %77 : vector<1x8x4xf32> to vector<8x4xf32>
    %cst_31 = arith.constant dense<0.000000e+00> : vector<8x64xf32>
    %79 = tpu.matmul %78, %76, %cst_31 {dimension_numbers = #tpu.dot_dimension_numbers<[1], [0], [0], [1], [0, 0, 1, 1], [], []>} : vector<8x4xf32>, vector<4x64xf32>, vector<8x64xf32> -> vector<8x64xf32>
    %80 = vector.extract_strided_slice %73 {offsets = [0, 1, 0, 0], sizes = [1, 1, 4, 64], strides = [1, 1, 1, 1]} : vector<1x4x4x73xf32> to vector<1x1x4x64xf32>
    %81 = vector.shape_cast %80 : vector<1x1x4x64xf32> to vector<4x64xf32>
    %c1 = arith.constant 1 : index
    %c0_32 = arith.constant 0 : index
    %c0_33 = arith.constant 0 : index
    %82 = vector.load %arg5[%c1, %c0_32, %c0_33] : memref<9x8x4xf32, #tpu.memory_space<vmem>>, vector<1x8x4xf32>
    %83 = vector.shape_cast %82 : vector<1x8x4xf32> to vector<8x4xf32>
    %cst_34 = arith.constant dense<0.000000e+00> : vector<8x64xf32>
    %84 = tpu.matmul %83, %81, %cst_34 {dimension_numbers = #tpu.dot_dimension_numbers<[1], [0], [0], [1], [0, 0, 1, 1], [], []>} : vector<8x4xf32>, vector<4x64xf32>, vector<8x64xf32> -> vector<8x64xf32>
    %85 = arith.addf %79, %84 : vector<8x64xf32>
    %86 = vector.extract_strided_slice %73 {offsets = [0, 0, 0, 1], sizes = [1, 1, 4, 64], strides = [1, 1, 1, 1]} : vector<1x4x4x73xf32> to vector<1x1x4x64xf32>
    %87 = vector.shape_cast %86 : vector<1x1x4x64xf32> to vector<4x64xf32>
    %c2 = arith.constant 2 : index
    %c0_35 = arith.constant 0 : index
    %c0_36 = arith.constant 0 : index
    %88 = vector.load %arg5[%c2, %c0_35, %c0_36] : memref<9x8x4xf32, #tpu.memory_space<vmem>>, vector<1x8x4xf32>
    %89 = vector.shape_cast %88 : vector<1x8x4xf32> to vector<8x4xf32>
    %cst_37 = arith.constant dense<0.000000e+00> : vector<8x64xf32>
    %90 = tpu.matmul %89, %87, %cst_37 {dimension_numbers = #tpu.dot_dimension_numbers<[1], [0], [0], [1], [0, 0, 1, 1], [], []>} : vector<8x4xf32>, vector<4x64xf32>, vector<8x64xf32> -> vector<8x64xf32>
    %91 = arith.addf %85, %90 : vector<8x64xf32>
    %92 = vector.extract_strided_slice %73 {offsets = [0, 2, 0, 0], sizes = [1, 1, 4, 64], strides = [1, 1, 1, 1]} : vector<1x4x4x73xf32> to vector<1x1x4x64xf32>
    %93 = vector.shape_cast %92 : vector<1x1x4x64xf32> to vector<4x64xf32>
    %c3 = arith.constant 3 : index
    %c0_38 = arith.constant 0 : index
    %c0_39 = arith.constant 0 : index
    %94 = vector.load %arg5[%c3, %c0_38, %c0_39] : memref<9x8x4xf32, #tpu.memory_space<vmem>>, vector<1x8x4xf32>
    %95 = vector.shape_cast %94 : vector<1x8x4xf32> to vector<8x4xf32>
    %cst_40 = arith.constant dense<0.000000e+00> : vector<8x64xf32>
    %96 = tpu.matmul %95, %93, %cst_40 {dimension_numbers = #tpu.dot_dimension_numbers<[1], [0], [0], [1], [0, 0, 1, 1], [], []>} : vector<8x4xf32>, vector<4x64xf32>, vector<8x64xf32> -> vector<8x64xf32>
    %97 = arith.addf %91, %96 : vector<8x64xf32>
    %98 = vector.extract_strided_slice %73 {offsets = [0, 3, 0, 0], sizes = [1, 1, 4, 64], strides = [1, 1, 1, 1]} : vector<1x4x4x73xf32> to vector<1x1x4x64xf32>
    %99 = vector.shape_cast %98 : vector<1x1x4x64xf32> to vector<4x64xf32>
    %c4 = arith.constant 4 : index
    %c0_41 = arith.constant 0 : index
    %c0_42 = arith.constant 0 : index
    %100 = vector.load %arg5[%c4, %c0_41, %c0_42] : memref<9x8x4xf32, #tpu.memory_space<vmem>>, vector<1x8x4xf32>
    %101 = vector.shape_cast %100 : vector<1x8x4xf32> to vector<8x4xf32>
    %cst_43 = arith.constant dense<0.000000e+00> : vector<8x64xf32>
    %102 = tpu.matmul %101, %99, %cst_43 {dimension_numbers = #tpu.dot_dimension_numbers<[1], [0], [0], [1], [0, 0, 1, 1], [], []>} : vector<8x4xf32>, vector<4x64xf32>, vector<8x64xf32> -> vector<8x64xf32>
    %103 = arith.addf %97, %102 : vector<8x64xf32>
    %104 = vector.extract_strided_slice %73 {offsets = [0, 2, 0, 1], sizes = [1, 1, 4, 64], strides = [1, 1, 1, 1]} : vector<1x4x4x73xf32> to vector<1x1x4x64xf32>
    %105 = vector.shape_cast %104 : vector<1x1x4x64xf32> to vector<4x64xf32>
    %c5 = arith.constant 5 : index
    %c0_44 = arith.constant 0 : index
    %c0_45 = arith.constant 0 : index
    %106 = vector.load %arg5[%c5, %c0_44, %c0_45] : memref<9x8x4xf32, #tpu.memory_space<vmem>>, vector<1x8x4xf32>
    %107 = vector.shape_cast %106 : vector<1x8x4xf32> to vector<8x4xf32>
    %cst_46 = arith.constant dense<0.000000e+00> : vector<8x64xf32>
    %108 = tpu.matmul %107, %105, %cst_46 {dimension_numbers = #tpu.dot_dimension_numbers<[1], [0], [0], [1], [0, 0, 1, 1], [], []>} : vector<8x4xf32>, vector<4x64xf32>, vector<8x64xf32> -> vector<8x64xf32>
    %109 = arith.addf %103, %108 : vector<8x64xf32>
    %110 = vector.extract_strided_slice %73 {offsets = [0, 0, 0, 8], sizes = [1, 1, 4, 64], strides = [1, 1, 1, 1]} : vector<1x4x4x73xf32> to vector<1x1x4x64xf32>
    %111 = vector.shape_cast %110 : vector<1x1x4x64xf32> to vector<4x64xf32>
    %c6 = arith.constant 6 : index
    %c0_47 = arith.constant 0 : index
    %c0_48 = arith.constant 0 : index
    %112 = vector.load %arg5[%c6, %c0_47, %c0_48] : memref<9x8x4xf32, #tpu.memory_space<vmem>>, vector<1x8x4xf32>
    %113 = vector.shape_cast %112 : vector<1x8x4xf32> to vector<8x4xf32>
    %cst_49 = arith.constant dense<0.000000e+00> : vector<8x64xf32>
    %114 = tpu.matmul %113, %111, %cst_49 {dimension_numbers = #tpu.dot_dimension_numbers<[1], [0], [0], [1], [0, 0, 1, 1], [], []>} : vector<8x4xf32>, vector<4x64xf32>, vector<8x64xf32> -> vector<8x64xf32>
    %115 = arith.addf %109, %114 : vector<8x64xf32>
    %116 = vector.extract_strided_slice %73 {offsets = [0, 1, 0, 8], sizes = [1, 1, 4, 64], strides = [1, 1, 1, 1]} : vector<1x4x4x73xf32> to vector<1x1x4x64xf32>
    %117 = vector.shape_cast %116 : vector<1x1x4x64xf32> to vector<4x64xf32>
    %c7 = arith.constant 7 : index
    %c0_50 = arith.constant 0 : index
    %c0_51 = arith.constant 0 : index
    %118 = vector.load %arg5[%c7, %c0_50, %c0_51] : memref<9x8x4xf32, #tpu.memory_space<vmem>>, vector<1x8x4xf32>
    %119 = vector.shape_cast %118 : vector<1x8x4xf32> to vector<8x4xf32>
    %cst_52 = arith.constant dense<0.000000e+00> : vector<8x64xf32>
    %120 = tpu.matmul %119, %117, %cst_52 {dimension_numbers = #tpu.dot_dimension_numbers<[1], [0], [0], [1], [0, 0, 1, 1], [], []>} : vector<8x4xf32>, vector<4x64xf32>, vector<8x64xf32> -> vector<8x64xf32>
    %121 = arith.addf %115, %120 : vector<8x64xf32>
    %122 = vector.extract_strided_slice %73 {offsets = [0, 0, 0, 9], sizes = [1, 1, 4, 64], strides = [1, 1, 1, 1]} : vector<1x4x4x73xf32> to vector<1x1x4x64xf32>
    %123 = vector.shape_cast %122 : vector<1x1x4x64xf32> to vector<4x64xf32>
    %c8 = arith.constant 8 : index
    %c0_53 = arith.constant 0 : index
    %c0_54 = arith.constant 0 : index
    %124 = vector.load %arg5[%c8, %c0_53, %c0_54] : memref<9x8x4xf32, #tpu.memory_space<vmem>>, vector<1x8x4xf32>
    %125 = vector.shape_cast %124 : vector<1x8x4xf32> to vector<8x4xf32>
    %cst_55 = arith.constant dense<0.000000e+00> : vector<8x64xf32>
    %126 = tpu.matmul %125, %123, %cst_55 {dimension_numbers = #tpu.dot_dimension_numbers<[1], [0], [0], [1], [0, 0, 1, 1], [], []>} : vector<8x4xf32>, vector<4x64xf32>, vector<8x64xf32> -> vector<8x64xf32>
    %127 = arith.addf %121, %126 : vector<8x64xf32>
    %128 = vector.broadcast %74 : vector<8x1xf32> to vector<8x64xf32>
    %129 = arith.addf %127, %128 : vector<8x64xf32>
    %c0_56 = arith.constant 0 : index
    %c0_57 = arith.constant 0 : index
    %c0_58 = arith.constant 0 : index
    %130 = vector.load %arg7[%c0_56, %c0_57, %c0_58] : memref<1x8x64xf32, #tpu.memory_space<vmem>>, vector<1x8x64xf32>
    %131 = vector.shape_cast %130 : vector<1x8x64xf32> to vector<8x64xf32>
    %132 = vector.shape_cast %129 : vector<8x64xf32> to vector<1x8x64xf32>
    tpu.vector_store %arg7[%c0_56, %c0_57, %c0_58], %132 {strides = array<i32>} : memref<1x8x64xf32, #tpu.memory_space<vmem>>, vector<1x8x64xf32>,
    return
  }
  func.func @transform_0(%arg0: i32) -> (i32, i32, i32, i32) {
    %c0_i32 = arith.constant 0 : i32
    %c0_i32_0 = arith.constant 0 : i32
    %c0_i32_1 = arith.constant 0 : i32
    %c0_i32_2 = arith.constant 0 : i32
    return %arg0, %c0_i32, %c0_i32_0, %c0_i32_1 : i32, i32, i32, i32
  }
  func.func @transform_1(%arg0: i32) -> (i32, i32, i32, i32) {
    %c0_i32 = arith.constant 0 : i32
    %c0_i32_0 = arith.constant 0 : i32
    %c0_i32_1 = arith.constant 0 : i32
    %c0_i32_2 = arith.constant 0 : i32
    return %arg0, %c0_i32, %c0_i32_0, %c0_i32_1 : i32, i32, i32, i32
  }
  func.func @transform_2(%arg0: i32) -> (i32, i32, i32, i32) {
    %c0_i32 = arith.constant 0 : i32
    %c0_i32_0 = arith.constant 0 : i32
    %c0_i32_1 = arith.constant 0 : i32
    %c0_i32_2 = arith.constant 0 : i32
    %c0_i32_3 = arith.constant 0 : i32
    return %c0_i32, %c0_i32_0, %c0_i32_1, %c0_i32_2 : i32, i32, i32, i32
  }
  func.func @transform_3(%arg0: i32) -> (i32, i32, i32, i32) {
    %c0_i32 = arith.constant 0 : i32
    %c0_i32_0 = arith.constant 0 : i32
    %c0_i32_1 = arith.constant 0 : i32
    %c0_i32_2 = arith.constant 0 : i32
    %c0_i32_3 = arith.constant 0 : i32
    return %c0_i32, %c0_i32_0, %c0_i32_1, %c0_i32_2 : i32, i32, i32, i32
  }
  func.func @transform_4(%arg0: i32) -> (i32, i32, i32) {
    %c0_i32 = arith.constant 0 : i32
    %c0_i32_0 = arith.constant 0 : i32
    %c0_i32_1 = arith.constant 0 : i32
    %c0_i32_2 = arith.constant 0 : i32
    return %c0_i32, %c0_i32_0, %c0_i32_1 : i32, i32, i32
  }
  func.func @transform_5(%arg0: i32) -> (i32, i32) {
    %c0_i32 = arith.constant 0 : i32
    %c0_i32_0 = arith.constant 0 : i32
    %c0_i32_1 = arith.constant 0 : i32
    return %c0_i32, %c0_i32_0 : i32, i32
  }
  func.func @transform_6(%arg0: i32) -> (i32, i32, i32) {
    %c0_i32 = arith.constant 0 : i32
    %c0_i32_0 = arith.constant 0 : i32
    %c0_i32_1 = arith.constant 0 : i32
    return %arg0, %c0_i32, %c0_i32_0 : i32, i32, i32
  }
}

</mosaic_0001>

<llo_original>
// kernel: tpu_custom_call.1
$region0: #{tpu_custom_call.1}
  #allocation0 [shape = 'u32[]', space=smem, size = 0x4, offset = 0x4, fixed_abs, tag = 'smem constant byte address 0x4 - core index']
  #allocation1 [shape = 'u32[72,128]{1,0:T(1,128)}', space=vmem, size = 0x9000, scoped, tag = 'internal scratch']
  %s0 = inlined_call_operand.vmem [shape: f32[2,4,4,73], index: 0, kind: input, shape index: {}]
  %s1 = inlined_call_operand.vmem [shape: f32[2,1,4,1], index: 1, kind: input, shape index: {}]
  %s2 = inlined_call_operand.vmem [shape: f32[1,1,4,1], index: 2, kind: input, shape index: {}]
  %s3 = inlined_call_operand.vmem [shape: f32[1,1,4,1], index: 3, kind: input, shape index: {}]
  %s4 = inlined_call_operand.vmem [shape: f32[9,8,4], index: 4, kind: input, shape index: {}]
  %s5 = inlined_call_operand.vmem [shape: f32[8,1], index: 5, kind: input, shape index: {}]
  %s6 = inlined_call_operand.hbm [shape: f32[2,8,64], index: 6, kind: output, shape index: {}]
  %s7 = sld [smem:[#allocation0]]
  $region57: #{tpu_custom_call.1} parent=0
    _
  %s9 = ssub.s32 1, %s7
  %s10 = scalar_select 0, %s9, %s7
  $region1: #{tpu_custom_call.1} parent=0
    #allocation2 [shape = 'u8[8192]{0}', space=vmem, size = 0x2000, scoped, tag = 'output window, operand 0']
    #allocation3 [shape = 's32[2]{0}', space=sflag, size = 0x8, scoped, tag = 'scoped memory for tpu_custom_call.1']
    %11 = vsyncpa [#allocation3], 0
    %s12 = scalar_lea.sflag [#allocation3], 1
    %13 = vsyncpa %s12, 0
    loop: start=0, step=1, limit=4
    $region2: #{tpu_custom_call.1} parent=1 // loop_pre_header
      _
    $region3: #{tpu_custom_call.1} parent=1 // loop_header
      %s15 = sphi 0, %s19
      %p16 = scmp.ge.s32.totalorder %s15, 4
      %s25 = sphi 0, %s27
      %s28 = sphi 0, %s25
      %s29 = sphi 0, %s28
      %s45 = sphi 0, %s29
      %s51 = sphi 0, %s53
      %s54 = sphi 0, %s51
      %s55 = sphi 0, %s54
      %s71 = sphi 0, %s55
      %s75 = sphi 0, %s75
      %s77 = sphi 0, %s75
      %s78 = sphi 0, %s77
      %s92 = sphi 0, %s78
      %s96 = sphi 0, %s96
      %s98 = sphi 0, %s96
      %s99 = sphi 0, %s98
      %s113 = sphi 0, %s99
      %s117 = sphi 0, %s117
      %s119 = sphi 0, %s117
      %s120 = sphi 0, %s119
      %s134 = sphi 0, %s120
      %s138 = sphi 0, %s138
      %s140 = sphi 0, %s138
      %s141 = sphi 0, %s140
      %s155 = sphi 0, %s141
      %s161 = sphi 0, %s163
      %s164 = sphi 0, %s161
      %s165 = sphi 0, %s164
      %s181 = sphi 0, %s165
    $region4: #{tpu_custom_call.1} parent=1 // loop_header_branch
      %18 = sbr.rel (%p16) target = $region8
    $region5: #{tpu_custom_call.1} parent=1 // loop_body
      %s20 = ssub.s32 %s15, 1
      %s21 = ssub.s32 %s15, 2
      %s22 = sadd.s32 %s15, 1
      %s23 = ssub.s32 %s15, %s22
      %p24 = scmp.eq.s32.totalorder %s23, 0
      %s26 = sadd.s32 %s25, 1
      %s27 = scalar_select %p24, %s25, %s26
      %p30 = pneg %p24
      %p31 = scmp.eq.s32.totalorder %s15, 1
      %p32 = por %p30, %p31
      %p33 = scmp.ne.s32.totalorder %s25, %s28
      %p34 = scmp.eq.s32.totalorder %s15, 0
      %p35 = por %p33, %p34
      %p36 = scmp.ne.s32.totalorder %s25, %s28
      %p37 = scmp.eq.s32.totalorder %s20, 1
      %p38 = por %p36, %p37
      %p39 = scmp.ne.s32.totalorder %s28, %s29
      %p40 = scmp.eq.s32.totalorder %s20, 0
      %p41 = por %p39, %p40
      %p42 = scmp.ne.s32.totalorder %s28, %s29
      %p43 = scmp.eq.s32.totalorder %s21, 1
      %p44 = por %p42, %p43
      %p46 = scmp.ne.s32.totalorder %s29, %s45
      %p47 = scmp.eq.s32.totalorder %s21, 0
      %p48 = por %p46, %p47
      %s49 = ssub.s32 %s15, %s22
      %p50 = scmp.eq.s32.totalorder %s49, 0
      %s52 = sadd.s32 %s51, 1
      %s53 = scalar_select %p50, %s51, %s52
      %p56 = pneg %p50
      %p57 = scmp.eq.s32.totalorder %s15, 1
      %p58 = por %p56, %p57
      %p59 = scmp.ne.s32.totalorder %s51, %s54
      %p60 = scmp.eq.s32.totalorder %s15, 0
      %p61 = por %p59, %p60
      %p62 = scmp.ne.s32.totalorder %s51, %s54
      %p63 = scmp.eq.s32.totalorder %s20, 1
      %p64 = por %p62, %p63
      %p65 = scmp.ne.s32.totalorder %s54, %s55
      %p66 = scmp.eq.s32.totalorder %s20, 0
      %p67 = por %p65, %p66
      %p68 = scmp.ne.s32.totalorder %s54, %s55
      %p69 = scmp.eq.s32.totalorder %s21, 1
      %p70 = por %p68, %p69
      %p72 = scmp.ne.s32.totalorder %s55, %s71
      %p73 = scmp.eq.s32.totalorder %s21, 0
      %p74 = por %p72, %p73
      %s76 = sadd.s32 %s75, 1
      %p79 = scmp.eq.s32.totalorder %s15, 1
      %p80 = scmp.ne.s32.totalorder %s75, %s77
      %p81 = scmp.eq.s32.totalorder %s15, 0
      %p82 = por %p80, %p81
      %p83 = scmp.ne.s32.totalorder %s75, %s77
      %p84 = scmp.eq.s32.totalorder %s20, 1
      %p85 = por %p83, %p84
      %p86 = scmp.ne.s32.totalorder %s77, %s78
      %p87 = scmp.eq.s32.totalorder %s20, 0
      %p88 = por %p86, %p87
      %p89 = scmp.ne.s32.totalorder %s77, %s78
      %p90 = scmp.eq.s32.totalorder %s21, 1
      %p91 = por %p89, %p90
      %p93 = scmp.ne.s32.totalorder %s78, %s92
      %p94 = scmp.eq.s32.totalorder %s21, 0
      %p95 = por %p93, %p94
      %s97 = sadd.s32 %s96, 1
      %p100 = scmp.eq.s32.totalorder %s15, 1
      %p101 = scmp.ne.s32.totalorder %s96, %s98
      %p102 = scmp.eq.s32.totalorder %s15, 0
      %p103 = por %p101, %p102
      %p104 = scmp.ne.s32.totalorder %s96, %s98
      %p105 = scmp.eq.s32.totalorder %s20, 1
      %p106 = por %p104, %p105
      %p107 = scmp.ne.s32.totalorder %s98, %s99
      %p108 = scmp.eq.s32.totalorder %s20, 0
      %p109 = por %p107, %p108
      %p110 = scmp.ne.s32.totalorder %s98, %s99
      %p111 = scmp.eq.s32.totalorder %s21, 1
      %p112 = por %p110, %p111
      %p114 = scmp.ne.s32.totalorder %s99, %s113
      %p115 = scmp.eq.s32.totalorder %s21, 0
      %p116 = por %p114, %p115
      %s118 = sadd.s32 %s117, 1
      %p121 = scmp.eq.s32.totalorder %s15, 1
      %p122 = scmp.ne.s32.totalorder %s117, %s119
      %p123 = scmp.eq.s32.totalorder %s15, 0
      %p124 = por %p122, %p123
      %p125 = scmp.ne.s32.totalorder %s117, %s119
      %p126 = scmp.eq.s32.totalorder %s20, 1
      %p127 = por %p125, %p126
      %p128 = scmp.ne.s32.totalorder %s119, %s120
      %p129 = scmp.eq.s32.totalorder %s20, 0
      %p130 = por %p128, %p129
      %p131 = scmp.ne.s32.totalorder %s119, %s120
      %p132 = scmp.eq.s32.totalorder %s21, 1
      %p133 = por %p131, %p132
      %p135 = scmp.ne.s32.totalorder %s120, %s134
      %p136 = scmp.eq.s32.totalorder %s21, 0
      %p137 = por %p135, %p136
      %s139 = sadd.s32 %s138, 1
      %p142 = scmp.eq.s32.totalorder %s15, 1
      %p143 = scmp.ne.s32.totalorder %s138, %s140
      %p144 = scmp.eq.s32.totalorder %s15, 0
      %p145 = por %p143, %p144
      %p146 = scmp.ne.s32.totalorder %s138, %s140
      %p147 = scmp.eq.s32.totalorder %s20, 1
      %p148 = por %p146, %p147
      %p149 = scmp.ne.s32.totalorder %s140, %s141
      %p150 = scmp.eq.s32.totalorder %s20, 0
      %p151 = por %p149, %p150
      %p152 = scmp.ne.s32.totalorder %s140, %s141
      %p153 = scmp.eq.s32.totalorder %s21, 1
      %p154 = por %p152, %p153
      %p156 = scmp.ne.s32.totalorder %s141, %s155
      %p157 = scmp.eq.s32.totalorder %s21, 0
      %p158 = por %p156, %p157
      %s159 = ssub.s32 %s15, %s22
      %p160 = scmp.eq.s32.totalorder %s159, 0
      %s162 = sadd.s32 %s161, 1
      %s163 = scalar_select %p160, %s161, %s162
      %p166 = pneg %p160
      %p167 = scmp.eq.s32.totalorder %s15, 1
      %p168 = por %p166, %p167
      %p169 = scmp.ne.s32.totalorder %s161, %s164
      %p170 = scmp.eq.s32.totalorder %s15, 0
      %p171 = por %p169, %p170
      %p172 = scmp.ne.s32.totalorder %s161, %s164
      %p173 = scmp.eq.s32.totalorder %s20, 1
      %p174 = por %p172, %p173
      %p175 = scmp.ne.s32.totalorder %s164, %s165
      %p176 = scmp.eq.s32.totalorder %s20, 0
      %p177 = por %p175, %p176
      %p178 = scmp.ne.s32.totalorder %s164, %s165
      %p179 = scmp.eq.s32.totalorder %s21, 1
      %p180 = por %p178, %p179
      %p182 = scmp.ne.s32.totalorder %s165, %s181
      %p183 = scmp.eq.s32.totalorder %s21, 0
      %p184 = por %p182, %p183
      %p185 = scmp.le.s32.totalorder 1, %s15
      %p186 = scmp.lt.s32.totalorder %s15, 3
      %p187 = pnand %p185, %p186
      %p188 = pneg %p187
      // Predicated region
      $region9: #{tpu_custom_call.1} parent=5 // pred_check
        _
      $region10: #{tpu_custom_call.1} parent=5 // pred_check_branch
        %190 = sbr.rel (%p187) target = $region12
      $region11: #{tpu_custom_call.1} parent=5 // pred_region
        %s191 = ssub.s32 %s15, 1
        // Predicated region
        $region13: #{tpu_custom_call.1} parent=11 // pred_check
          %p192 = pneg %p88
        $region14: #{tpu_custom_call.1} parent=11 // pred_check_branch
          %194 = sbr.rel (%p192) target = $region16
        $region15: #{tpu_custom_call.1} parent=11 // pred_region
          _
        $region16: #{tpu_custom_call.1} parent=11 // pred_fallthru
          _
        // Predicated region
        $region17: #{tpu_custom_call.1} parent=11 // pred_check
          %p195 = pneg %p109
        $region18: #{tpu_custom_call.1} parent=11 // pred_check_branch
          %197 = sbr.rel (%p195) target = $region20
        $region19: #{tpu_custom_call.1} parent=11 // pred_region
          _
        $region20: #{tpu_custom_call.1} parent=11 // pred_fallthru
          _
        // Predicated region
        $region21: #{tpu_custom_call.1} parent=11 // pred_check
          %p198 = pneg %p130
        $region22: #{tpu_custom_call.1} parent=11 // pred_check_branch
          %200 = sbr.rel (%p198) target = $region24
        $region23: #{tpu_custom_call.1} parent=11 // pred_region
          _
        $region24: #{tpu_custom_call.1} parent=11 // pred_fallthru
          _
        // Predicated region
        $region25: #{tpu_custom_call.1} parent=11 // pred_check
          %p201 = pneg %p151
        $region26: #{tpu_custom_call.1} parent=11 // pred_check_branch
          %203 = sbr.rel (%p201) target = $region28
        $region27: #{tpu_custom_call.1} parent=11 // pred_region
          _
        $region28: #{tpu_custom_call.1} parent=11 // pred_fallthru
          _
      $region12: #{tpu_custom_call.1} parent=5 // pred_fallthru
        _
      %p204 = scmp.lt.s32.totalorder %s15, 2
      // Predicated region
      $region29: #{tpu_custom_call.1} parent=5 // pred_check
        %p205 = pneg %p204
      $region30: #{tpu_custom_call.1} parent=5 // pred_check_branch
        %207 = sbr.rel (%p205) target = $region32
      $region31: #{tpu_custom_call.1} parent=5 // pred_region
        // Predicated region
        $region33: #{tpu_custom_call.1} parent=31 // pred_check
          %p208 = pneg %p35
        $region34: #{tpu_custom_call.1} parent=31 // pred_check_branch
          %210 = sbr.rel (%p208) target = $region36
        $region35: #{tpu_custom_call.1} parent=31 // pred_region
          %p211 = scmp.lt.s32.totalorder %s15, 1
          %s212 = scalar_select %p211, %s15, 1
          %s213 = smul.addr %s212, 4
          %s214 = smul.addr %s213, 4
          %s215 = scalar_lea.vmem %s0, %s214
        $region36: #{tpu_custom_call.1} parent=31 // pred_fallthru
          _
        // Predicated region
        $region37: #{tpu_custom_call.1} parent=31 // pred_check
          %p216 = pneg %p61
        $region38: #{tpu_custom_call.1} parent=31 // pred_check_branch
          %218 = sbr.rel (%p216) target = $region40
        $region39: #{tpu_custom_call.1} parent=31 // pred_region
          %p219 = scmp.lt.s32.totalorder %s15, 1
          %s220 = scalar_select %p219, %s15, 1
          %s221 = smul.addr %s220, 4
          %s222 = scalar_lea.vmem %s1, %s221
        $region40: #{tpu_custom_call.1} parent=31 // pred_fallthru
          _
      $region32: #{tpu_custom_call.1} parent=5 // pred_fallthru
        _
      %p223 = scmp.le.s32.totalorder 1, %s15
      %p224 = scmp.lt.s32.totalorder %s15, 3
      %p225 = pnand %p223, %p224
      %p226 = pneg %p225
      // Predicated region
      $region41: #{tpu_custom_call.1} parent=5 // pred_check
        _
      $region42: #{tpu_custom_call.1} parent=5 // pred_check_branch
        %228 = sbr.rel (%p225) target = $region44
      $region43: #{tpu_custom_call.1} parent=5 // pred_region
        %s229 = ssub.s32 %s15, 1
        %p230 = scmp.lt.s32.totalorder %s20, 1
        %s231 = scalar_select %p230, %s20, 1
        %s232 = smul.addr %s231, 4
        %s233 = smul.addr %s232, 4
        %s234 = scalar_lea.vmem %s0, %s233
        %p235 = pneg %p41
        %p236 = pneg %p38
        %p237 = scmp.lt.s32.totalorder %s20, 1
        %s238 = scalar_select %p237, %s20, 1
        %s239 = smul.addr %s238, 4
        %s240 = scalar_lea.vmem %s1, %s239
        %p241 = pneg %p67
        %p242 = pneg %p64
        %p243 = pneg %p88
        %p244 = pneg %p85
        %p245 = pneg %p109
        %p246 = pneg %p106
        %p247 = pneg %p130
        %p248 = pneg %p127
        %p249 = pneg %p151
        %p250 = pneg %p148
        %p251 = pneg %p177
        %p252 = pneg %p174
        %s253 = sand.u32 %s164, 1
        %s254 = scalar_lea.sflag [#allocation3], %s253
        %s255 = sand.u32 %s164, 1
        %s256 = smul.addr %s255, 8
        %s257 = scalar_lea.vmem [#allocation2], %s256
        %p258 = scmp.lt.s32.totalorder %s20, 1
        %s259 = scalar_select %p258, %s20, 1
        %s260 = smul.addr %s259, 4
        %s261 = smul.addr %s260, 4
        %s262 = scalar_lea.vmem %s0, %s261
        %p263 = scmp.lt.s32.totalorder %s20, 1
        %s264 = scalar_select %p263, %s20, 1
        %s265 = smul.addr %s264, 4
        %s266 = scalar_lea.vmem %s1, %s265
        %v267 = vld [vmem:[%s262] sm:$0xf]
        %v268 = vld [vmem:[%s262 + $0x4] sm:$0xf]
        %v269 = vld [vmem:[%s262 + $0x8] sm:$0xf]
        %v270 = vld [vmem:[%s262 + $0xc] sm:$0xf]
        %v271 = vld [vmem:[%s266] sm:$0xf]
        %273 = vset.pattern.permute.xlu0 0
        %274 = vperm.xlu0 %273, %v271
        %v275 = vpop.permute.xlu0 %274
        %v277 = vadd.f32 %v267, %v275
        %v278 = vadd.f32 %v268, %v275
        %v279 = vadd.f32 %v269, %v275
        %v280 = vadd.f32 %v270, %v275
        %vm281 = vcmask 519168
        %v282 = vsel %vm281, %v277, 0.0
        %283 = vadd.xlane.f32.xlu0 %v282
        %v284 = vpop.xlane.xlu0 %283
        %v285 = vsel %vm281, %v278, 0.0
        %286 = vadd.xlane.f32.xlu0 %v285
        %v287 = vpop.xlane.xlu0 %286
        %v288 = vsel %vm281, %v279, 0.0
        %289 = vadd.xlane.f32.xlu0 %v288
        %v290 = vpop.xlane.xlu0 %289
        %v291 = vsel %vm281, %v280, 0.0
        %292 = vadd.xlane.f32.xlu0 %v291
        %v293 = vpop.xlane.xlu0 %292
        %v294 = vadd.f32 %v284, %v287
        %v295 = vadd.f32 %v294, %v290
        %v296 = vadd.f32 %v295, %v293
        %vm297 = vcmask 1041408
        %v298 = vsel %vm297, %v296, 0.0
        %v299 = vrot.slane %v298, 4
        %v300 = vadd.f32 %v298, %v299
        %v301 = vrot.slane %v300, 2
        %v302 = vadd.f32 %v300, %v301
        %v303 = vrot.slane %v302, 1
        %v304 = vadd.f32 %v302, %v303
        %v305 = vmul.f32 %v304, 0.001953125
        %v307 = vrot.slane %v296, 2
        %v309 = vsel %vm297, %v307, 0.0
        %v310 = vrot.slane %v309, 4
        %v311 = vadd.f32 %v309, %v310
        %v312 = vrot.slane %v311, 2
        %v313 = vadd.f32 %v311, %v312
        %v314 = vrot.slane %v313, 1
        %v315 = vadd.f32 %v313, %v314
        %v316 = vmul.f32 %v315, 0.001953125
        %v317 = vsel %vm297, %v305, %v316
        %319 = vset.pattern.permute.xlu0 0
        %320 = vperm.xlu0 %319, %v317
        %v321 = vpop.permute.xlu0 %320
        %v323 = vsub.f32 %v277, %v321
        %v324 = vsub.f32 %v278, %v321
        %v325 = vsub.f32 %v279, %v321
        %v326 = vsub.f32 %v280, %v321
        %v327 = vmul.f32 %v323, %v323
        %v328 = vmul.f32 %v324, %v324
        %v329 = vmul.f32 %v325, %v325
        %v330 = vmul.f32 %v326, %v326
        %v331 = vsel %vm281, %v327, 0.0
        %332 = vadd.xlane.f32.xlu0 %v331
        %v333 = vpop.xlane.xlu0 %332
        %v334 = vsel %vm281, %v328, 0.0
        %335 = vadd.xlane.f32.xlu0 %v334
        %v336 = vpop.xlane.xlu0 %335
        %v337 = vsel %vm281, %v329, 0.0
        %338 = vadd.xlane.f32.xlu0 %v337
        %v339 = vpop.xlane.xlu0 %338
        %v340 = vsel %vm281, %v330, 0.0
        %341 = vadd.xlane.f32.xlu0 %v340
        %v342 = vpop.xlane.xlu0 %341
        %v343 = vadd.f32 %v333, %v336
        %v344 = vadd.f32 %v343, %v339
        %v345 = vadd.f32 %v344, %v342
        %v346 = vsel %vm297, %v345, 0.0
        %v347 = vrot.slane %v346, 4
        %v348 = vadd.f32 %v346, %v347
        %v349 = vrot.slane %v348, 2
        %v350 = vadd.f32 %v348, %v349
        %v351 = vrot.slane %v350, 1
        %v352 = vadd.f32 %v350, %v351
        %v353 = vmul.f32 %v352, 0.001953125
        %v355 = vrot.slane %v345, 2
        %v357 = vsel %vm297, %v355, 0.0
        %v358 = vrot.slane %v357, 4
        %v359 = vadd.f32 %v357, %v358
        %v360 = vrot.slane %v359, 2
        %v361 = vadd.f32 %v359, %v360
        %v362 = vrot.slane %v361, 1
        %v363 = vadd.f32 %v361, %v362
        %v364 = vmul.f32 %v363, 0.001953125
        %v365 = vsel %vm297, %v353, %v364
        %v366 = vadd.f32 %v365, 1e-05
        %v367 = vrsqrt.pop %v366
        %v368 = vmul.f32 %v367, %v366
        %v369 = vmul.f32 %v368, %v367
        %v370 = vmul.f32 0.5, %v369
        %v371 = vsub.f32 1.5, %v370
        %v372 = vmul.f32 %v367, %v371
        %vm373 = vweird.f32 %v366
        %vm374 = vweird.f32 %v367
        %vm375 = vmor %vm373, %vm374
        %v376 = vsel %vm375, %v367, %v372
        %v377 = vld [vmem:[%s2] sm:$0xf]
        %v378 = vmul.f32 %v376, %v377
        %v379 = vld [vmem:[%s3] sm:$0xf]
        %v380 = vmul.f32 %v317, %v378
        %v381 = vsub.f32 %v379, %v380
        %383 = vset.pattern.permute.xlu0 0
        %384 = vperm.xlu0 %383, %v378
        %v385 = vpop.permute.xlu0 %384
        %v387 = vmul.f32 %v277, %v385
        %v388 = vmul.f32 %v278, %v385
        %v389 = vmul.f32 %v279, %v385
        %v390 = vmul.f32 %v280, %v385
        %392 = vset.pattern.permute.xlu0 0
        %393 = vperm.xlu0 %392, %v381
        %v394 = vpop.permute.xlu0 %393
        %v396 = vadd.f32 %v387, %v394
        %v397 = vadd.f32 %v388, %v394
        %v398 = vadd.f32 %v389, %v394
        %v399 = vadd.f32 %v390, %v394
        %v400 = vxor.u32 %v396, 2147483648
        %v401 = vxor.u32 %v397, 2147483648
        %v402 = vxor.u32 %v398, 2147483648
        %v403 = vxor.u32 %v399, 2147483648
        %v404 = vmul.f32 %v400, 1.442695
        %v405 = vpow.pop %v404
        %v406 = vmul.f32 %v401, 1.442695
        %v407 = vpow.pop %v406
        %v408 = vmul.f32 %v402, 1.442695
        %v409 = vpow.pop %v408
        %v410 = vmul.f32 %v403, 1.442695
        %v411 = vpow.pop %v410
        %v412 = vadd.f32 %v405, 1.0
        %v413 = vadd.f32 %v407, 1.0
        %v414 = vadd.f32 %v409, 1.0
        %v415 = vadd.f32 %v411, 1.0
        %v416 = vrcp.pop %v412
        %v417 = vmul.f32 %v412, %v416
        %v418 = vsub.f32 1.0, %v417
        %v419 = vmul.f32 %v416, %v418
        %v420 = vadd.f32 %v416, %v419
        %vm421 = vweird.f32 %v412
        %vm422 = vweird.f32 %v416
        %vm423 = vmor %vm421, %vm422
        %v424 = vsel %vm423, %v416, %v420
        %v425 = vand.u32 2147483647, %v412
        %vm426 = vcmp.eq.f32.partialorder %v425, 8.507059e+37
        %v427 = vand.u32 %v412, 2147483648
        %v428 = vor.u32 1.1754944e-38, %v427
        %v429 = vsel %vm426, %v428, %v424
        %v430 = vmul.f32 1.0, %v429
        %v431 = vrcp.pop %v413
        %v432 = vmul.f32 %v413, %v431
        %v433 = vsub.f32 1.0, %v432
        %v434 = vmul.f32 %v431, %v433
        %v435 = vadd.f32 %v431, %v434
        %vm436 = vweird.f32 %v413
        %vm437 = vweird.f32 %v431
        %vm438 = vmor %vm436, %vm437
        %v439 = vsel %vm438, %v431, %v435
        %v440 = vand.u32 2147483647, %v413
        %vm441 = vcmp.eq.f32.partialorder %v440, 8.507059e+37
        %v442 = vand.u32 %v413, 2147483648
        %v443 = vor.u32 1.1754944e-38, %v442
        %v444 = vsel %vm441, %v443, %v439
        %v445 = vmul.f32 1.0, %v444
        %v446 = vrcp.pop %v414
        %v447 = vmul.f32 %v414, %v446
        %v448 = vsub.f32 1.0, %v447
        %v449 = vmul.f32 %v446, %v448
        %v450 = vadd.f32 %v446, %v449
        %vm451 = vweird.f32 %v414
        %vm452 = vweird.f32 %v446
        %vm453 = vmor %vm451, %vm452
        %v454 = vsel %vm453, %v446, %v450
        %v455 = vand.u32 2147483647, %v414
        %vm456 = vcmp.eq.f32.partialorder %v455, 8.507059e+37
        %v457 = vand.u32 %v414, 2147483648
        %v458 = vor.u32 1.1754944e-38, %v457
        %v459 = vsel %vm456, %v458, %v454
        %v460 = vmul.f32 1.0, %v459
        %v461 = vrcp.pop %v415
        %v462 = vmul.f32 %v415, %v461
        %v463 = vsub.f32 1.0, %v462
        %v464 = vmul.f32 %v461, %v463
        %v465 = vadd.f32 %v461, %v464
        %vm466 = vweird.f32 %v415
        %vm467 = vweird.f32 %v461
        %vm468 = vmor %vm466, %vm467
        %v469 = vsel %vm468, %v461, %v465
        %v470 = vand.u32 2147483647, %v415
        %vm471 = vcmp.eq.f32.partialorder %v470, 8.507059e+37
        %v472 = vand.u32 %v415, 2147483648
        %v473 = vor.u32 1.1754944e-38, %v472
        %v474 = vsel %vm471, %v473, %v469
        %v475 = vmul.f32 1.0, %v474
        %v476 = vmul.f32 %v396, %v430
        %v477 = vmul.f32 %v397, %v445
        %v478 = vmul.f32 %v398, %v460
        %v479 = vmul.f32 %v399, %v475
        %v480 = vld [vmem:[%s5] sm:$0xff]
        %v481 = vld [vmem:[%s4] sm:$0xff]
        %s482 = scalar_lea.vmem %s4, 8
        %v483 = vld [vmem:[%s482] sm:$0xff]
        %vm484 = vcmask 31744
        %v486 = vsel %vm484, %v483, 0
        %vm488 = vcmask 1043456
        %v490 = vsel %vm488, %v477, 0
        %492 = vmatpush.msra.mxu0 0.0
        %493 = vmatpush.msra.mxu0 0.0
        %494 = vmatpush.msra.mxu0 0.0
        %495 = vmatpush.msra.mxu0 0.0
        %496 = vmatpush.msra.mxu0 0.0
        %497 = vmatpush.msra.mxu0 0.0
        %498 = vmatpush.msra.mxu0 0.0
        %499 = vmatpush.msra.mxu0 0.0
        %500 = vmatpush.msra.mxu0 0.0
        %501 = vmatpush.msra.mxu0 0.0
        %502 = vmatpush.msra.mxu0 0.0
        %503 = vmatpush.msra.mxu0 0.0
        %504 = vmatpush.msra.mxu0 0.0
        %505 = vmatpush.msra.mxu0 0.0
        %506 = vmatpush.msra.mxu0 0.0
        %507 = vmatpush.msra.mxu0 %v490
        %508 = vmatmul.f32.gmra.mxu0 %v486
        %v509 = vpop.f32.mrf.mxu0
        %v510 = vadd.f32 0.0, %v509
        %511 = vdwg.mxu0
        %v513 = vsel %vm484, %v481, 0
        %v516 = vsel %vm488, %v476, 0
        %518 = vmatpush.msra.mxu0 0.0
        %519 = vmatpush.msra.mxu0 0.0
        %520 = vmatpush.msra.mxu0 0.0
        %521 = vmatpush.msra.mxu0 0.0
        %522 = vmatpush.msra.mxu0 0.0
        %523 = vmatpush.msra.mxu0 0.0
        %524 = vmatpush.msra.mxu0 0.0
        %525 = vmatpush.msra.mxu0 0.0
        %526 = vmatpush.msra.mxu0 0.0
        %527 = vmatpush.msra.mxu0 0.0
        %528 = vmatpush.msra.mxu0 0.0
        %529 = vmatpush.msra.mxu0 0.0
        %530 = vmatpush.msra.mxu0 0.0
        %531 = vmatpush.msra.mxu0 0.0
        %532 = vmatpush.msra.mxu0 0.0
        %533 = vmatpush.msra.mxu0 %v516
        %534 = vmatmul.f32.gmra.mxu0 %v513
        %v535 = vpop.f32.mrf.mxu0
        %v536 = vadd.f32 %v510, %v535
        %537 = vdwg.mxu0
        %s538 = scalar_lea.vmem %s4, 16
        %v539 = vld [vmem:[%s538] sm:$0xff]
        %540 = vrot.lane.b32.xlu0 %v476, 127
        %v541 = vpop.permute.xlu0 %540
        %v543 = vsel %vm484, %v539, 0
        %v545 = vsel %vm488, %v541, 0
        %547 = vmatpush.msra.mxu0 0.0
        %548 = vmatpush.msra.mxu0 0.0
        %549 = vmatpush.msra.mxu0 0.0
        %550 = vmatpush.msra.mxu0 0.0
        %551 = vmatpush.msra.mxu0 0.0
        %552 = vmatpush.msra.mxu0 0.0
        %553 = vmatpush.msra.mxu0 0.0
        %554 = vmatpush.msra.mxu0 0.0
        %555 = vmatpush.msra.mxu0 0.0
        %556 = vmatpush.msra.mxu0 0.0
        %557 = vmatpush.msra.mxu0 0.0
        %558 = vmatpush.msra.mxu0 0.0
        %559 = vmatpush.msra.mxu0 0.0
        %560 = vmatpush.msra.mxu0 0.0
        %561 = vmatpush.msra.mxu0 0.0
        %562 = vmatpush.msra.mxu0 %v545
        %563 = vmatmul.f32.gmra.mxu0 %v543
        %v564 = vpop.f32.mrf.mxu0
        %v565 = vadd.f32 0.0, %v564
        %566 = vdwg.mxu0
        %v567 = vadd.f32 %v536, %v565
        %s568 = scalar_lea.vmem %s4, 24
        %v569 = vld [vmem:[%s568] sm:$0xff]
        %v571 = vsel %vm484, %v569, 0
        %v574 = vsel %vm488, %v478, 0
        %576 = vmatpush.msra.mxu0 0.0
        %577 = vmatpush.msra.mxu0 0.0
        %578 = vmatpush.msra.mxu0 0.0
        %579 = vmatpush.msra.mxu0 0.0
        %580 = vmatpush.msra.mxu0 0.0
        %581 = vmatpush.msra.mxu0 0.0
        %582 = vmatpush.msra.mxu0 0.0
        %583 = vmatpush.msra.mxu0 0.0
        %584 = vmatpush.msra.mxu0 0.0
        %585 = vmatpush.msra.mxu0 0.0
        %586 = vmatpush.msra.mxu0 0.0
        %587 = vmatpush.msra.mxu0 0.0
        %588 = vmatpush.msra.mxu0 0.0
        %589 = vmatpush.msra.mxu0 0.0
        %590 = vmatpush.msra.mxu0 0.0
        %591 = vmatpush.msra.mxu0 %v574
        %592 = vmatmul.f32.gmra.mxu0 %v571
        %v593 = vpop.f32.mrf.mxu0
        %v594 = vadd.f32 0.0, %v593
        %595 = vdwg.mxu0
        %v596 = vadd.f32 %v567, %v594
        %s597 = scalar_lea.vmem %s4, 32
        %v598 = vld [vmem:[%s597] sm:$0xff]
        %v600 = vsel %vm484, %v598, 0
        %v603 = vsel %vm488, %v479, 0
        %605 = vmatpush.msra.mxu0 0.0
        %606 = vmatpush.msra.mxu0 0.0
        %607 = vmatpush.msra.mxu0 0.0
        %608 = vmatpush.msra.mxu0 0.0
        %609 = vmatpush.msra.mxu0 0.0
        %610 = vmatpush.msra.mxu0 0.0
        %611 = vmatpush.msra.mxu0 0.0
        %612 = vmatpush.msra.mxu0 0.0
        %613 = vmatpush.msra.mxu0 0.0
        %614 = vmatpush.msra.mxu0 0.0
        %615 = vmatpush.msra.mxu0 0.0
        %616 = vmatpush.msra.mxu0 0.0
        %617 = vmatpush.msra.mxu0 0.0
        %618 = vmatpush.msra.mxu0 0.0
        %619 = vmatpush.msra.mxu0 0.0
        %620 = vmatpush.msra.mxu0 %v603
        %621 = vmatmul.f32.gmra.mxu0 %v600
        %v622 = vpop.f32.mrf.mxu0
        %v623 = vadd.f32 0.0, %v622
        %624 = vdwg.mxu0
        %v625 = vadd.f32 %v596, %v623
        %s626 = scalar_lea.vmem %s4, 40
        %v627 = vld [vmem:[%s626] sm:$0xff]
        %628 = vrot.lane.b32.xlu0 %v478, 127
        %v629 = vpop.permute.xlu0 %628
        %v631 = vsel %vm484, %v627, 0
        %v633 = vsel %vm488, %v629, 0
        %635 = vmatpush.msra.mxu0 0.0
        %636 = vmatpush.msra.mxu0 0.0
        %637 = vmatpush.msra.mxu0 0.0
        %638 = vmatpush.msra.mxu0 0.0
        %639 = vmatpush.msra.mxu0 0.0
        %640 = vmatpush.msra.mxu0 0.0
        %641 = vmatpush.msra.mxu0 0.0
        %642 = vmatpush.msra.mxu0 0.0
        %643 = vmatpush.msra.mxu0 0.0
        %644 = vmatpush.msra.mxu0 0.0
        %645 = vmatpush.msra.mxu0 0.0
        %646 = vmatpush.msra.mxu0 0.0
        %647 = vmatpush.msra.mxu0 0.0
        %648 = vmatpush.msra.mxu0 0.0
        %649 = vmatpush.msra.mxu0 0.0
        %650 = vmatpush.msra.mxu0 %v633
        %651 = vmatmul.f32.gmra.mxu0 %v631
        %v652 = vpop.f32.mrf.mxu0
        %v653 = vadd.f32 0.0, %v652
        %654 = vdwg.mxu0
        %v655 = vadd.f32 %v625, %v653
        %s656 = scalar_lea.vmem %s4, 48
        %v657 = vld [vmem:[%s656] sm:$0xff]
        %658 = vrot.lane.b32.xlu0 %v476, 120
        %v659 = vpop.permute.xlu0 %658
        %v661 = vsel %vm484, %v657, 0
        %v663 = vsel %vm488, %v659, 0
        %665 = vmatpush.msra.mxu0 0.0
        %666 = vmatpush.msra.mxu0 0.0
        %667 = vmatpush.msra.mxu0 0.0
        %668 = vmatpush.msra.mxu0 0.0
        %669 = vmatpush.msra.mxu0 0.0
        %670 = vmatpush.msra.mxu0 0.0
        %671 = vmatpush.msra.mxu0 0.0
        %672 = vmatpush.msra.mxu0 0.0
        %673 = vmatpush.msra.mxu0 0.0
        %674 = vmatpush.msra.mxu0 0.0
        %675 = vmatpush.msra.mxu0 0.0
        %676 = vmatpush.msra.mxu0 0.0
        %677 = vmatpush.msra.mxu0 0.0
        %678 = vmatpush.msra.mxu0 0.0
        %679 = vmatpush.msra.mxu0 0.0
        %680 = vmatpush.msra.mxu0 %v663
        %681 = vmatmul.f32.gmra.mxu0 %v661
        %v682 = vpop.f32.mrf.mxu0
        %v683 = vadd.f32 0.0, %v682
        %684 = vdwg.mxu0
        %v685 = vadd.f32 %v655, %v683
        %s686 = scalar_lea.vmem %s4, 56
        %v687 = vld [vmem:[%s686] sm:$0xff]
        %688 = vrot.lane.b32.xlu0 %v477, 120
        %v689 = vpop.permute.xlu0 %688
        %v691 = vsel %vm484, %v687, 0
        %v693 = vsel %vm488, %v689, 0
        %695 = vmatpush.msra.mxu0 0.0
        %696 = vmatpush.msra.mxu0 0.0
        %697 = vmatpush.msra.mxu0 0.0
        %698 = vmatpush.msra.mxu0 0.0
        %699 = vmatpush.msra.mxu0 0.0
        %700 = vmatpush.msra.mxu0 0.0
        %701 = vmatpush.msra.mxu0 0.0
        %702 = vmatpush.msra.mxu0 0.0
        %703 = vmatpush.msra.mxu0 0.0
        %704 = vmatpush.msra.mxu0 0.0
        %705 = vmatpush.msra.mxu0 0.0
        %706 = vmatpush.msra.mxu0 0.0
        %707 = vmatpush.msra.mxu0 0.0
        %708 = vmatpush.msra.mxu0 0.0
        %709 = vmatpush.msra.mxu0 0.0
        %710 = vmatpush.msra.mxu0 %v693
        %711 = vmatmul.f32.gmra.mxu0 %v691
        %v712 = vpop.f32.mrf.mxu0
        %v713 = vadd.f32 0.0, %v712
        %714 = vdwg.mxu0
        %v715 = vadd.f32 %v685, %v713
        %s716 = scalar_lea.vmem %s4, 64
        %v717 = vld [vmem:[%s716] sm:$0xff]
        %718 = vrot.lane.b32.xlu0 %v476, 119
        %v719 = vpop.permute.xlu0 %718
        %v721 = vsel %vm484, %v717, 0
        %v723 = vsel %vm488, %v719, 0
        %725 = vmatpush.msra.mxu0 0.0
        %726 = vmatpush.msra.mxu0 0.0
        %727 = vmatpush.msra.mxu0 0.0
        %728 = vmatpush.msra.mxu0 0.0
        %729 = vmatpush.msra.mxu0 0.0
        %730 = vmatpush.msra.mxu0 0.0
        %731 = vmatpush.msra.mxu0 0.0
        %732 = vmatpush.msra.mxu0 0.0
        %733 = vmatpush.msra.mxu0 0.0
        %734 = vmatpush.msra.mxu0 0.0
        %735 = vmatpush.msra.mxu0 0.0
        %736 = vmatpush.msra.mxu0 0.0
        %737 = vmatpush.msra.mxu0 0.0
        %738 = vmatpush.msra.mxu0 0.0
        %739 = vmatpush.msra.mxu0 0.0
        %740 = vmatpush.msra.mxu0 %v723
        %741 = vmatmul.f32.gmra.mxu0 %v721
        %v742 = vpop.f32.mrf.mxu0
        %v743 = vadd.f32 0.0, %v742
        %744 = vdwg.mxu0
        %v745 = vadd.f32 %v715, %v743
        %747 = vset.pattern.permute.xlu0 0
        %748 = vperm.xlu0 %747, %v480
        %v749 = vpop.permute.xlu0 %748
        %v751 = vadd.f32 %v745, %v749
        %vm752 = vcmask 523264
        %753 = vst.msk [vmem:[%s257] sm:$0xff] %vm752, %v751
        %s754 = sand.u32 %s164, 1
        %s755 = scalar_lea.sflag [#allocation3], %s754
        %s756 = sand.u32 %s164, 1
        %s757 = smul.addr %s756, 8
        %s758 = scalar_lea.vmem [#allocation2], %s757
        // Predicated region
        $region45: #{tpu_custom_call.1} parent=43 // pred_check
          %p759 = pneg %p174
        $region46: #{tpu_custom_call.1} parent=43 // pred_check_branch
          %761 = sbr.rel (%p759) target = $region48
        $region47: #{tpu_custom_call.1} parent=43 // pred_region
          %763 = vsyncadd %s755, 0
          %s764 = smul.addr %s20, 8
          %s765 = scalar_lea.hbm %s6, %s764
          %s767 = sshll.u32 %s758, 4
          %s768 = int_to_ptr.vmem [resolvable:$true] %s767
          %s769 = sshll.u32 %s765, 4
          %s770 = int_to_ptr.hbm [resolvable:$true] %s769
          %772 = dma.vmem_to_hbm [thread:$0]  %s768, 128, %s770, %s755
        $region48: #{tpu_custom_call.1} parent=43 // pred_fallthru
          _
      $region44: #{tpu_custom_call.1} parent=5 // pred_fallthru
        _
      %p773 = scmp.le.s32.totalorder 2, %s15
      // Predicated region
      $region49: #{tpu_custom_call.1} parent=5 // pred_check
        %p774 = pneg %p773
      $region50: #{tpu_custom_call.1} parent=5 // pred_check_branch
        %776 = sbr.rel (%p774) target = $region52
      $region51: #{tpu_custom_call.1} parent=5 // pred_region
        %s777 = ssub.s32 %s15, 2
        // Predicated region
        $region53: #{tpu_custom_call.1} parent=51 // pred_check
          %p778 = pneg %p180
        $region54: #{tpu_custom_call.1} parent=51 // pred_check_branch
          %780 = sbr.rel (%p778) target = $region56
        $region55: #{tpu_custom_call.1} parent=51 // pred_region
          %s781 = sand.u32 %s165, 1
          %s782 = scalar_lea.sflag [#allocation3], %s781
          %s783 = sand.u32 %s165, 1
          %s784 = smul.addr %s783, 8
          %s785 = scalar_lea.vmem [#allocation2], %s784
          %787 = dma.done %s782, 128
        $region56: #{tpu_custom_call.1} parent=51 // pred_fallthru
          _
      $region52: #{tpu_custom_call.1} parent=5 // pred_fallthru
        _
    $region6: #{tpu_custom_call.1} parent=1 // loop_footer
      %s19 = sadd.s32 1, %s15
    $region7: #{tpu_custom_call.1} parent=1 // loop_footer_branch
      %14 = sbr.rel target = $region3
    $region8: #{tpu_custom_call.1} parent=1 // loop_exit
      _
    %788 = vsyncpa [#allocation3], 1
    %s789 = scalar_lea.sflag [#allocation3], 1
    %790 = vsyncpa %s789, 1

</llo_original>
